<compile_context>
chip_gen: v7x
topology: tpu7x:2x2x1
jax: 0.10.0
libtpu: 0.0.40
codegen_flags: <defaults>
</compile_context>

<pallas_src>
import jax
import jax.numpy as jnp
from jax import lax
from jax.experimental import pallas as pl
from jax.experimental.pallas import tpu as pltpu


def decoder_kernel(x_ref, w1_ref, w2_ref, o_ref):
    # x_ref:  [TB, latent_dim]           (batch tile)
    # w1_ref: [hidden_dim, latent_dim]   (PyTorch nn.Linear layout, resident)
    # w2_ref: [input_dim, hidden_dim]    (PyTorch nn.Linear layout, resident)
    # o_ref:  [TB, input_dim]
    x = x_ref[...].astype(jnp.bfloat16)
    w1 = w1_ref[...].astype(jnp.bfloat16)
    w2 = w2_ref[...].astype(jnp.bfloat16)

    # Contract on the weight's axis 1 (== x @ W^T), f32 accumulation on MXU.
    dims = (((1,), (1,)), ((), ()))
    h = lax.dot_general(x, w1, dims, preferred_element_type=jnp.float32)
    h = jnp.maximum(h, 0.0)  # ReLU in f32 on the VPU (v5e has no bf16 VPU)
    out = lax.dot_general(h.astype(jnp.bfloat16), w2, dims,
                          preferred_element_type=jnp.float32)
    o_ref[...] = out.astype(o_ref.dtype)


def _pick_batch_tile(B, block_batch):
    """Largest multiple-of-8 divisor of B that is <= block_batch; else B."""
    if B <= block_batch:
        return B
    tb = (block_batch // 8) * 8
    while tb >= 8:
        if B % tb == 0:
            return tb
        tb -= 8
    return B


def decoder_forward(x, w_latent, w_output, *, block_batch=512):
    """x: [B, latent_dim]; w_latent: [hidden, latent]; w_output: [input, hidden]
    (PyTorch nn.Linear weight convention, NOT transposed). Returns [B, input_dim]."""
    B, latent_dim = x.shape
    hidden_dim, latent_dim_w = w_latent.shape
    input_dim, hidden_dim_w = w_output.shape
    assert latent_dim_w == latent_dim and hidden_dim_w == hidden_dim

    tb = _pick_batch_tile(B, block_batch)
    grid = (B // tb,)

    flops = 2 * B * latent_dim * hidden_dim + 2 * B * hidden_dim * input_dim
    bytes_accessed = 4 * (B * latent_dim + hidden_dim * latent_dim
                          + input_dim * hidden_dim + B * input_dim)
    cost = pl.CostEstimate(flops=flops, transcendentals=0,
                           bytes_accessed=bytes_accessed)

    return pl.pallas_call(
        decoder_kernel,
        out_shape=jax.ShapeDtypeStruct((B, input_dim), x.dtype),
        grid_spec=pltpu.PrefetchScalarGridSpec(
            num_scalar_prefetch=0,
            grid=grid,
            in_specs=[
                # Activations: tiled over batch.
                pl.BlockSpec((tb, latent_dim), lambda i: (i, 0)),
                # Weights: VMEM-resident across all batch tiles.
                pl.BlockSpec((hidden_dim, latent_dim), lambda i: (0, 0)),
                pl.BlockSpec((input_dim, hidden_dim), lambda i: (0, 0)),
            ],
            out_specs=pl.BlockSpec((tb, input_dim), lambda i: (i, 0)),
        ),
        compiler_params=pltpu.CompilerParams(
            dimension_semantics=("parallel",)),
        cost_estimate=cost,
    )(x, w_latent, w_output)


if __name__ == "__main__":
    # Shapes implied by Decoder(input_dim, hidden_dim, latent_dim)
    batch = 8
    input_dim = 64
    hidden_dim = 32
    latent_dim = 16

    key = jax.random.PRNGKey(0)
    kx, k1, k2 = jax.random.split(key, 3)

    x = jax.random.normal(kx, (batch, latent_dim), dtype=jnp.float32)
    # nn.Linear weight shapes: [out_features, in_features]
    w_latent = jax.random.normal(k1, (hidden_dim, latent_dim), dtype=jnp.float32) * 0.1
    w_output = jax.random.normal(k2, (input_dim, hidden_dim), dtype=jnp.float32) * 0.1

    out = decoder_forward(x, w_latent, w_output)
    out = jax.block_until_ready(out)

    # Pure-JAX f32 reference (kernel uses bf16 MXU inputs with f32 accumulate,
    # so tolerance is loosened vs. exact f32).
    ref = jnp.maximum(x @ w_latent.T, 0.0) @ w_output.T
    assert out.shape == (batch, input_dim)
    assert jnp.allclose(out, ref, atol=5e-3, rtol=2e-2), "mismatch vs reference"

    print("KERNEL_OK")
</pallas_src>

<mosaic_0001>
module attributes {stable_mosaic.version = 11 : i64} {
  func.func @decoder_kernel(%arg0: i32, %arg1: memref<8x16xf32, #tpu.memory_space<vmem>>, %arg2: memref<32x16xf32, #tpu.memory_space<vmem>>, %arg3: memref<64x32xf32, #tpu.memory_space<vmem>>, %arg4: memref<8x64xf32, #tpu.memory_space<vmem>>) attributes {dimension_semantics = [#tpu.dimension_semantics<parallel>], iteration_bounds = array<i64: 1>, scalar_prefetch = 0 : i64, scratch_operands = 0 : i64, tpu.core_type = #tpu.core_type<tc>, window_params = [{transform_indices = @transform_0, window_bounds = array<i64: 8, 16>}, {pipeline_mode = #tpu.pipeline_mode<synchronous>, transform_indices = @transform_1, window_bounds = array<i64: 32, 16>}, {pipeline_mode = #tpu.pipeline_mode<synchronous>, transform_indices = @transform_2, window_bounds = array<i64: 64, 32>}, {transform_indices = @transform_3, window_bounds = array<i64: 8, 64>}]} {
    %c0 = arith.constant 0 : index
    %c0_0 = arith.constant 0 : index
    %0 = vector.load %arg1[%c0, %c0_0] : memref<8x16xf32, #tpu.memory_space<vmem>>, vector<8x16xf32>
    %1 = arith.truncf %0 : vector<8x16xf32> to vector<8x16xbf16>
    %c0_1 = arith.constant 0 : index
    %c0_2 = arith.constant 0 : index
    %2 = vector.load %arg2[%c0_1, %c0_2] : memref<32x16xf32, #tpu.memory_space<vmem>>, vector<32x16xf32>
    %3 = arith.truncf %2 : vector<32x16xf32> to vector<32x16xbf16>
    %c0_3 = arith.constant 0 : index
    %c0_4 = arith.constant 0 : index
    %4 = vector.load %arg3[%c0_3, %c0_4] : memref<64x32xf32, #tpu.memory_space<vmem>>, vector<64x32xf32>
    %5 = arith.truncf %4 : vector<64x32xf32> to vector<64x32xbf16>
    %cst = arith.constant dense<0.000000e+00> : vector<8x32xf32>
    %6 = tpu.matmul %1, %3, %cst {dimension_numbers = #tpu.dot_dimension_numbers<[1], [1], [0], [0], [0, 0, 1, 0], [], []>} : vector<8x16xbf16>, vector<32x16xbf16>, vector<8x32xf32> -> vector<8x32xf32>
    %cst_5 = arith.constant 0.000000e+00 : f32
    %7 = vector.broadcast %cst_5 : f32 to vector<8x32xf32>
    %8 = arith.maximumf %6, %7 : vector<8x32xf32>
    %9 = arith.truncf %8 : vector<8x32xf32> to vector<8x32xbf16>
    %cst_6 = arith.constant dense<0.000000e+00> : vector<8x64xf32>
    %10 = tpu.matmul %9, %5, %cst_6 {dimension_numbers = #tpu.dot_dimension_numbers<[1], [1], [0], [0], [0, 0, 1, 0], [], []>} : vector<8x32xbf16>, vector<64x32xbf16>, vector<8x64xf32> -> vector<8x64xf32>
    %c0_7 = arith.constant 0 : index
    %c0_8 = arith.constant 0 : index
    %11 = vector.load %arg4[%c0_7, %c0_8] : memref<8x64xf32, #tpu.memory_space<vmem>>, vector<8x64xf32>
    tpu.vector_store %arg4[%c0_7, %c0_8], %10 {strides = array<i32>} : memref<8x64xf32, #tpu.memory_space<vmem>>, vector<8x64xf32>,
    return
  }
  func.func @transform_0(%arg0: i32) -> (i32, i32) {
    %c0_i32 = arith.constant 0 : i32
    %c0_i32_0 = arith.constant 0 : i32
    return %arg0, %c0_i32 : i32, i32
  }
  func.func @transform_1(%arg0: i32) -> (i32, i32) {
    %c0_i32 = arith.constant 0 : i32
    %c0_i32_0 = arith.constant 0 : i32
    %c0_i32_1 = arith.constant 0 : i32
    return %c0_i32, %c0_i32_0 : i32, i32
  }
  func.func @transform_2(%arg0: i32) -> (i32, i32) {
    %c0_i32 = arith.constant 0 : i32
    %c0_i32_0 = arith.constant 0 : i32
    %c0_i32_1 = arith.constant 0 : i32
    return %c0_i32, %c0_i32_0 : i32, i32
  }
  func.func @transform_3(%arg0: i32) -> (i32, i32) {
    %c0_i32 = arith.constant 0 : i32
    %c0_i32_0 = arith.constant 0 : i32
    return %arg0, %c0_i32 : i32, i32
  }
}

</mosaic_0001>

<llo_original>
// kernel: tpu_custom_call.1
$region0: #{tpu_custom_call.1}
  #allocation0 [shape = 'u32[]', space=smem, size = 0x4, offset = 0x4, fixed_abs, tag = 'smem constant byte address 0x4 - core index']
  #allocation1 [shape = 'u32[144,128]{1,0:T(1,128)}', space=vmem, size = 0x12000, scoped, tag = 'internal scratch']
  %s0 = inlined_call_operand.vmem [shape: f32[8,16], index: 0, kind: input, shape index: {}]
  %s1 = inlined_call_operand.vmem [shape: f32[32,16], index: 1, kind: input, shape index: {}]
  %s2 = inlined_call_operand.vmem [shape: f32[64,32], index: 2, kind: input, shape index: {}]
  %s3 = inlined_call_operand.hbm [shape: f32[8,64], index: 3, kind: output, shape index: {}]
  %s4 = sld [smem:[#allocation0]]
  $region22: #{tpu_custom_call.1} parent=0
    _
  %s6 = ssub.s32 1, %s4
  %s7 = scalar_select 0, %s6, %s4
  $region1: #{tpu_custom_call.1} parent=0
    #allocation2 [shape = 'u8[4096]{0}', space=vmem, size = 0x1000, scoped, tag = 'output window, operand 0, single buffered']
    #allocation3 [shape = 's32[1]{0}', space=sflag, size = 0x4, scoped, tag = 'scoped memory for tpu_custom_call.1']
    %8 = vsyncpa [#allocation3], 0
    // Predicated region
    $region2: #{tpu_custom_call.1} parent=1 // pred_check
      _
    $region3: #{tpu_custom_call.1} parent=1 // pred_check_branch
      %10 = sbr.rel (0) target = $region5
    $region4: #{tpu_custom_call.1} parent=1 // pred_region
      _
    $region5: #{tpu_custom_call.1} parent=1 // pred_fallthru
      _
    // Predicated region
    $region6: #{tpu_custom_call.1} parent=1 // pred_check
      _
    $region7: #{tpu_custom_call.1} parent=1 // pred_check_branch
      %12 = sbr.rel (0) target = $region9
    $region8: #{tpu_custom_call.1} parent=1 // pred_region
      _
    $region9: #{tpu_custom_call.1} parent=1 // pred_fallthru
      _
    // Predicated region
    $region10: #{tpu_custom_call.1} parent=1 // pred_check
      _
    $region11: #{tpu_custom_call.1} parent=1 // pred_check_branch
      %14 = sbr.rel (0) target = $region13
    $region12: #{tpu_custom_call.1} parent=1 // pred_region
      _
    $region13: #{tpu_custom_call.1} parent=1 // pred_fallthru
      _
    %v16 = vld [vmem:[%s0] sm:$0xff]
    %v17 = vpack.c.bf16 %v16, %v16
    %v18 = vld [vmem:[%s1] sm:$0xff]
    %v19 = vld [vmem:[%s1 + $0x8] sm:$0xff]
    %v20 = vld [vmem:[%s1 + $0x10] sm:$0xff]
    %v21 = vld [vmem:[%s1 + $0x18] sm:$0xff]
    %v22 = vpack.c.bf16 %v19, %v18
    %v23 = vpack.c.bf16 %v21, %v20
    %v24 = vld [vmem:[%s2] sm:$0xff]
    %v25 = vld [vmem:[%s2 + $0x8] sm:$0xff]
    %v26 = vld [vmem:[%s2 + $0x10] sm:$0xff]
    %v27 = vld [vmem:[%s2 + $0x18] sm:$0xff]
    %v28 = vld [vmem:[%s2 + $0x20] sm:$0xff]
    %v29 = vld [vmem:[%s2 + $0x28] sm:$0xff]
    %v30 = vld [vmem:[%s2 + $0x30] sm:$0xff]
    %v31 = vld [vmem:[%s2 + $0x38] sm:$0xff]
    %v32 = vpack.c.bf16 %v25, %v24
    %v33 = vpack.c.bf16 %v27, %v26
    %v34 = vpack.c.bf16 %v29, %v28
    %v35 = vpack.c.bf16 %v31, %v30
    %vm36 = vcmask 130048
    %v38 = vsel %vm36, %v17, 0
    %v41 = vsel %vm36, %v22, 0
    %v44 = vsel %vm36, %v23, 0
    %46 = vmatprep.subr.bf16.mxu0 0
    %47 = vmatpush1.bf16.xpose.msra.mxu0 %v41
    %48 = vmatprep.subr.bf16.mxu0 0
    %49 = vmatpush1.bf16.xpose.msra.mxu0 %v44
    %50 = vmatprep.subr.bf16.mxu0 0
    %51 = vmatpush1.bf16.xpose.msra.mxu0 0
    %52 = vmatprep.subr.bf16.mxu0 0
    %53 = vmatpush1.bf16.xpose.msra.mxu0 0
    %54 = vmatprep.subr.bf16.mxu0 0
    %55 = vmatpush1.bf16.xpose.msra.mxu0 0
    %56 = vmatprep.subr.bf16.mxu0 0
    %57 = vmatpush1.bf16.xpose.msra.mxu0 0
    %58 = vmatprep.subr.bf16.mxu0 0
    %59 = vmatpush1.bf16.xpose.msra.mxu0 0
    %60 = vmatprep.subr.bf16.mxu0 0
    %61 = vmatpush1.bf16.xpose.msra.mxu0 0
    %62 = vmatprep.subr.bf16.mxu0 0
    %63 = vmatpush1.bf16.xpose.msra.mxu0 0
    %64 = vmatprep.subr.bf16.mxu0 0
    %65 = vmatpush1.bf16.xpose.msra.mxu0 0
    %66 = vmatprep.subr.bf16.mxu0 0
    %67 = vmatpush1.bf16.xpose.msra.mxu0 0
    %68 = vmatprep.subr.bf16.mxu0 0
    %69 = vmatpush1.bf16.xpose.msra.mxu0 0
    %70 = vmatprep.subr.bf16.mxu0 0
    %71 = vmatpush1.bf16.xpose.msra.mxu0 0
    %72 = vmatprep.subr.bf16.mxu0 0
    %73 = vmatpush1.bf16.xpose.msra.mxu0 0
    %74 = vmatprep.subr.bf16.mxu0 0
    %75 = vmatpush1.bf16.xpose.msra.mxu0 0
    %76 = vmatprep.subr.bf16.mxu0 0
    %77 = vmatpush1.bf16.xpose.msra.mxu0 0
    %78 = vmatprep.mubr.bf16.mxu0 0
    %79 = vmatmul.mubr.bf16.gmra.mrb[0].mxu0 %v38
    %v80 = vpop.f32.mrb[0].mxu0
    %v81 = vadd.f32 0.0, %v80
    %v82 = vpop.f32.mrb[0].mxu0
    %v83 = vpop.f32.mrb[0].mxu0
    %v84 = vpop.f32.mrb[0].mxu0
    %85 = vdwg.mxu0
    %v86 = vmax.f32 %v81, 0.0
    %v87 = vpack.c.bf16 %v86, %v86
    %vm88 = vcmask 261120
    %v90 = vsel %vm88, %v87, 0
    %v93 = vsel %vm88, %v32, 0
    %v96 = vsel %vm88, %v33, 0
    %v99 = vsel %vm88, %v34, 0
    %v102 = vsel %vm88, %v35, 0
    %104 = vmatprep.subr.bf16.mxu0 0
    %105 = vmatpush1.bf16.xpose.msra.mxu0 %v93
    %106 = vmatprep.subr.bf16.mxu0 0
    %107 = vmatpush1.bf16.xpose.msra.mxu0 %v96
    %108 = vmatprep.subr.bf16.mxu0 0
    %109 = vmatpush1.bf16.xpose.msra.mxu0 %v99
    %110 = vmatprep.subr.bf16.mxu0 0
    %111 = vmatpush1.bf16.xpose.msra.mxu0 %v102
    %112 = vmatprep.subr.bf16.mxu0 0
    %113 = vmatpush1.bf16.xpose.msra.mxu0 0
    %114 = vmatprep.subr.bf16.mxu0 0
    %115 = vmatpush1.bf16.xpose.msra.mxu0 0
    %116 = vmatprep.subr.bf16.mxu0 0
    %117 = vmatpush1.bf16.xpose.msra.mxu0 0
    %118 = vmatprep.subr.bf16.mxu0 0
    %119 = vmatpush1.bf16.xpose.msra.mxu0 0
    %120 = vmatprep.subr.bf16.mxu0 0
    %121 = vmatpush1.bf16.xpose.msra.mxu0 0
    %122 = vmatprep.subr.bf16.mxu0 0
    %123 = vmatpush1.bf16.xpose.msra.mxu0 0
    %124 = vmatprep.subr.bf16.mxu0 0
    %125 = vmatpush1.bf16.xpose.msra.mxu0 0
    %126 = vmatprep.subr.bf16.mxu0 0
    %127 = vmatpush1.bf16.xpose.msra.mxu0 0
    %128 = vmatprep.subr.bf16.mxu0 0
    %129 = vmatpush1.bf16.xpose.msra.mxu0 0
    %130 = vmatprep.subr.bf16.mxu0 0
    %131 = vmatpush1.bf16.xpose.msra.mxu0 0
    %132 = vmatprep.subr.bf16.mxu0 0
    %133 = vmatpush1.bf16.xpose.msra.mxu0 0
    %134 = vmatprep.subr.bf16.mxu0 0
    %135 = vmatpush1.bf16.xpose.msra.mxu0 0
    %136 = vmatprep.mubr.bf16.mxu0 0
    %137 = vmatmul.mubr.bf16.gmra.mrb[0].mxu0 %v90
    %v138 = vpop.f32.mrb[0].mxu0
    %v139 = vadd.f32 0.0, %v138
    %v140 = vpop.f32.mrb[0].mxu0
    %v141 = vpop.f32.mrb[0].mxu0
    %v142 = vpop.f32.mrb[0].mxu0
    %143 = vdwg.mxu0
    %vm144 = vcmask 523264
    %145 = vst.msk [vmem:[#allocation2] sm:$0xff] %vm144, %v139
    // Predicated region
    $region14: #{tpu_custom_call.1} parent=1 // pred_check
      _
    $region15: #{tpu_custom_call.1} parent=1 // pred_check_branch
      %147 = sbr.rel (0) target = $region17
    $region16: #{tpu_custom_call.1} parent=1 // pred_region
      %s149 = ssub.s32 128, 128
      %150 = vsyncadd [#allocation3], %s149
      %s152 = sshll.u32 [#allocation2], 4
      %s153 = int_to_ptr.vmem [resolvable:$true] %s152
      %155 = dma.vmem_to_hbm [thread:$0]  %s153, 128, %s3, [#allocation3]
    $region17: #{tpu_custom_call.1} parent=1 // pred_fallthru
      _
    // Predicated region
    $region18: #{tpu_custom_call.1} parent=1 // pred_check
      _
    $region19: #{tpu_custom_call.1} parent=1 // pred_check_branch
      %157 = sbr.rel (0) target = $region21
    $region20: #{tpu_custom_call.1} parent=1 // pred_region
      %158 = dma.done [#allocation3], 128
    $region21: #{tpu_custom_call.1} parent=1 // pred_fallthru
      _
    %159 = vsyncpa [#allocation3], 1

</llo_original>
